<compile_context>
chip_gen: v7x
topology: tpu7x:2x2x1
jax: 0.10.0
libtpu: 0.0.40
codegen_flags: <defaults>
</compile_context>

<pallas_src>
import functools

import jax
import jax.numpy as jnp
from jax import lax
from jax.experimental import pallas as pl
from jax.experimental.pallas import tpu as pltpu

_LANE = 128  # TPU vreg lane width


def _round_up(x, m):
    return (x + m - 1) // m * m


def _resmlp_kernel(x_ref, wh_ref, gamma_ref, beta_ref, wl_ref, bl_ref,
                   out_ref, *, n_hidden_layers, batch, eps):
    """Whole ResMLP forward on one VMEM-resident (lane-padded) tile.

    x_ref     : (B, Dp)           input activations (zero-padded features)
    wh_ref    : (L-1, Dp, Dp)     hidden Linear weights, pre-transposed (in, out)
    gamma_ref : (L-1, 1, Dp)      BatchNorm1d weight (padded with 1)
    beta_ref  : (L-1, 1, Dp)      BatchNorm1d bias   (padded with 0)
    wl_ref    : (Dp, Op)          last Linear weight, pre-transposed (zero padded)
    bl_ref    : (1, Op)           last Linear bias (zero padded)
    out_ref   : (B, Op)           lane-dense output slab
    """
    x = x_ref[...].astype(jnp.float32)
    inv_b = jnp.float32(1.0 / batch)

    # n_hidden_layers is static -> loop unrolls at trace time.
    for i in range(n_hidden_layers):
        # Hidden bias omitted: constant per-feature shift cancels in BatchNorm.
        y = jnp.dot(x, wh_ref[i], preferred_element_type=jnp.float32)

        # Single-pass batch statistics over axis=0 (full batch in this block).
        s1 = jnp.sum(y, axis=0, keepdims=True)
        s2 = jnp.sum(y * y, axis=0, keepdims=True)
        mean = s1 * inv_b
        var = jnp.maximum(s2 * inv_b - mean * mean, 0.0)   # biased variance

        # Fused BN normalize + affine: one mul + one add on the VPU.
        scale = gamma_ref[i] * lax.rsqrt(var + eps)        # rsqrt -> EUP slot
        shift = beta_ref[i] - mean * scale
        y = y * scale + shift

        # activation == 'ReLU' (module default), then residual.
        y = jnp.maximum(y, 0.0)
        x = x + y

    out = jnp.dot(x, wl_ref[...], preferred_element_type=jnp.float32) + bl_ref[...]
    out_ref[...] = out.astype(out_ref.dtype)


def resmlp_forward(x, wh, bh, gamma, beta, wl, bl, *, eps=1e-5):
    """Pallas wrapper.

    Pads the feature dim D and output dim O up to the 128-lane width with
    zeros (layout plumbing only; padded columns stay exactly zero through the
    network), runs the whole forward in one VMEM-resident pallas_call, and
    slices the real output columns off afterwards.

    `bh` (hidden Linear biases) is accepted for API parity with the PyTorch
    module but is not used: a per-feature constant added before BatchNorm is
    mathematically dead (cancels in mean subtraction, does not change var).
    """
    del bh
    B, D = x.shape
    O = wl.shape[1]
    n_hidden_layers = wh.shape[0]

    Dp = _round_up(max(D, 1), _LANE)
    Op = _round_up(max(O, 1), _LANE)

    x_p = jnp.pad(x, ((0, 0), (0, Dp - D)))
    wh_p = jnp.pad(wh, ((0, 0), (0, Dp - D), (0, Dp - D)))
    gamma_p = jnp.pad(gamma, ((0, 0), (0, 0), (0, Dp - D)), constant_values=1.0)
    beta_p = jnp.pad(beta, ((0, 0), (0, 0), (0, Dp - D)))
    wl_p = jnp.pad(wl, ((0, Dp - D), (0, Op - O)))
    bl_p = jnp.pad(bl, ((0, 0), (0, Op - O)))

    kernel = functools.partial(
        _resmlp_kernel, n_hidden_layers=n_hidden_layers, batch=B, eps=eps)

    vmem_spec = pl.BlockSpec(memory_space=pltpu.MemorySpace.VMEM)
    out_p = pl.pallas_call(
        kernel,
        out_shape=jax.ShapeDtypeStruct((B, Op), x.dtype),
        in_specs=[vmem_spec] * 6,
        out_specs=vmem_spec,
    )(x_p, wh_p, gamma_p, beta_p, wl_p, bl_p)

    return out_p[:, :O]


def resmlp_reference(x, wh, bh, gamma, beta, wl, bl, *, eps=1e-5):
    """Pure-JAX reference mirroring the PyTorch forward() (bias included)."""
    x = x.astype(jnp.float32)
    for i in range(wh.shape[0]):
        y = x @ wh[i] + bh[i]
        mean = jnp.mean(y, axis=0, keepdims=True)
        var = jnp.mean((y - mean) ** 2, axis=0, keepdims=True)
        y = (y - mean) / jnp.sqrt(var + eps)
        y = y * gamma[i] + beta[i]
        y = jnp.maximum(y, 0.0)
        x = x + y
    return x @ wl + bl


if __name__ == "__main__":
    # Module hyperparameters (hidden_size is forced equal to input_size).
    B = 8            # batch (> 1 so the BatchNorm branch is taken; multiple of 8)
    D = 32           # input_size == hidden_size
    O = 4            # output_size
    N_LAYERS = 3     # -> 2 residual (Linear + BN + ReLU) blocks + final Linear

    key = jax.random.PRNGKey(0)
    keys = jax.random.split(key, 6)

    # Deterministic parameter init (shapes per nn.Linear / nn.BatchNorm1d).
    # Hidden Linear weights stored pre-transposed as (in, out) = (D, D).
    lim_h = 1.0 / jnp.sqrt(D)
    wh = jax.random.uniform(keys[0], (N_LAYERS - 1, D, D),
                            minval=-lim_h, maxval=lim_h, dtype=jnp.float32)
    bh = jax.random.uniform(keys[1], (N_LAYERS - 1, 1, D),
                            minval=-lim_h, maxval=lim_h, dtype=jnp.float32)
    # BatchNorm1d default affine init: weight=1, bias=0.
    gamma = jnp.ones((N_LAYERS - 1, 1, D), jnp.float32)
    beta = jnp.zeros((N_LAYERS - 1, 1, D), jnp.float32)
    # Final Linear: weight (O, D) in PyTorch -> stored transposed (D, O).
    wl = jax.random.uniform(keys[2], (D, O),
                            minval=-lim_h, maxval=lim_h, dtype=jnp.float32)
    bl = jax.random.uniform(keys[3], (1, O),
                            minval=-lim_h, maxval=lim_h, dtype=jnp.float32)

    x = jax.random.normal(keys[4], (B, D), dtype=jnp.float32)

    out = resmlp_forward(x, wh, bh, gamma, beta, wl, bl)
    out = jax.block_until_ready(out)

    ref = resmlp_reference(x, wh, bh, gamma, beta, wl, bl)
    assert out.shape == (B, O), out.shape
    assert jnp.allclose(out, ref, atol=1e-4, rtol=1e-4), \
        f"max abs err = {jnp.max(jnp.abs(out - ref))}"

    print("KERNEL_OK")
</pallas_src>

<mosaic_0001>
module attributes {stable_mosaic.version = 11 : i64} {
  func.func @_resmlp_kernel(%arg0: memref<8x128xf32, #tpu.memory_space<vmem>>, %arg1: memref<2x128x128xf32, #tpu.memory_space<vmem>>, %arg2: memref<2x1x128xf32, #tpu.memory_space<vmem>>, %arg3: memref<2x1x128xf32, #tpu.memory_space<vmem>>, %arg4: memref<128x128xf32, #tpu.memory_space<vmem>>, %arg5: memref<1x128xf32, #tpu.memory_space<vmem>>, %arg6: memref<8x128xf32, #tpu.memory_space<vmem>>) attributes {dimension_semantics = [], scalar_prefetch = 0 : i64, scratch_operands = 0 : i64, tpu.core_type = #tpu.core_type<tc>} {
    %c0 = arith.constant 0 : index
    %c0_0 = arith.constant 0 : index
    %0 = vector.load %arg0[%c0, %c0_0] : memref<8x128xf32, #tpu.memory_space<vmem>>, vector<8x128xf32>
    %c0_1 = arith.constant 0 : index
    %c0_2 = arith.constant 0 : index
    %c0_3 = arith.constant 0 : index
    %1 = vector.load %arg1[%c0_1, %c0_2, %c0_3] : memref<2x128x128xf32, #tpu.memory_space<vmem>>, vector<1x128x128xf32>
    %2 = vector.shape_cast %1 : vector<1x128x128xf32> to vector<128x128xf32>
    %cst = arith.constant dense<0.000000e+00> : vector<8x128xf32>
    %3 = tpu.matmul %0, %2, %cst {dimension_numbers = #tpu.dot_dimension_numbers<[1], [0], [0], [1], [0, 0, 1, 1], [], []>} : vector<8x128xf32>, vector<128x128xf32>, vector<8x128xf32> -> vector<8x128xf32>
    %cst_4 = arith.constant dense<0.000000e+00> : vector<128xf32>
    %4 = vector.multi_reduction <add>, %3, %cst_4 [0] : vector<8x128xf32> to vector<128xf32>
    %5 = vector.shape_cast %4 : vector<128xf32> to vector<1x128xf32>
    %6 = arith.mulf %3, %3 : vector<8x128xf32>
    %cst_5 = arith.constant dense<0.000000e+00> : vector<128xf32>
    %7 = vector.multi_reduction <add>, %6, %cst_5 [0] : vector<8x128xf32> to vector<128xf32>
    %8 = vector.shape_cast %7 : vector<128xf32> to vector<1x128xf32>
    %cst_6 = arith.constant 1.250000e-01 : f32
    %9 = vector.broadcast %cst_6 : f32 to vector<1x128xf32>
    %10 = arith.mulf %5, %9 : vector<1x128xf32>
    %cst_7 = arith.constant 1.250000e-01 : f32
    %11 = vector.broadcast %cst_7 : f32 to vector<1x128xf32>
    %12 = arith.mulf %8, %11 : vector<1x128xf32>
    %13 = arith.mulf %10, %10 : vector<1x128xf32>
    %14 = arith.subf %12, %13 : vector<1x128xf32>
    %cst_8 = arith.constant 0.000000e+00 : f32
    %15 = vector.broadcast %cst_8 : f32 to vector<1x128xf32>
    %16 = arith.maximumf %14, %15 : vector<1x128xf32>
    %c0_9 = arith.constant 0 : index
    %c0_10 = arith.constant 0 : index
    %c0_11 = arith.constant 0 : index
    %17 = vector.load %arg2[%c0_9, %c0_10, %c0_11] : memref<2x1x128xf32, #tpu.memory_space<vmem>>, vector<1x1x128xf32>
    %18 = vector.shape_cast %17 : vector<1x1x128xf32> to vector<1x128xf32>
    %cst_12 = arith.constant 9.99999974E-6 : f32
    %19 = vector.broadcast %cst_12 : f32 to vector<1x128xf32>
    %20 = arith.addf %16, %19 : vector<1x128xf32>
    %21 = math.rsqrt %20 : vector<1x128xf32>
    %22 = arith.mulf %18, %21 : vector<1x128xf32>
    %c0_13 = arith.constant 0 : index
    %c0_14 = arith.constant 0 : index
    %c0_15 = arith.constant 0 : index
    %23 = vector.load %arg3[%c0_13, %c0_14, %c0_15] : memref<2x1x128xf32, #tpu.memory_space<vmem>>, vector<1x1x128xf32>
    %24 = vector.shape_cast %23 : vector<1x1x128xf32> to vector<1x128xf32>
    %25 = arith.mulf %10, %22 : vector<1x128xf32>
    %26 = arith.subf %24, %25 : vector<1x128xf32>
    %27 = vector.broadcast %22 : vector<1x128xf32> to vector<8x128xf32>
    %28 = arith.mulf %3, %27 : vector<8x128xf32>
    %29 = vector.broadcast %26 : vector<1x128xf32> to vector<8x128xf32>
    %30 = arith.addf %28, %29 : vector<8x128xf32>
    %cst_16 = arith.constant 0.000000e+00 : f32
    %31 = vector.broadcast %cst_16 : f32 to vector<8x128xf32>
    %32 = arith.maximumf %30, %31 : vector<8x128xf32>
    %33 = arith.addf %0, %32 : vector<8x128xf32>
    %c1 = arith.constant 1 : index
    %c0_17 = arith.constant 0 : index
    %c0_18 = arith.constant 0 : index
    %34 = vector.load %arg1[%c1, %c0_17, %c0_18] : memref<2x128x128xf32, #tpu.memory_space<vmem>>, vector<1x128x128xf32>
    %35 = vector.shape_cast %34 : vector<1x128x128xf32> to vector<128x128xf32>
    %cst_19 = arith.constant dense<0.000000e+00> : vector<8x128xf32>
    %36 = tpu.matmul %33, %35, %cst_19 {dimension_numbers = #tpu.dot_dimension_numbers<[1], [0], [0], [1], [0, 0, 1, 1], [], []>} : vector<8x128xf32>, vector<128x128xf32>, vector<8x128xf32> -> vector<8x128xf32>
    %cst_20 = arith.constant dense<0.000000e+00> : vector<128xf32>
    %37 = vector.multi_reduction <add>, %36, %cst_20 [0] : vector<8x128xf32> to vector<128xf32>
    %38 = vector.shape_cast %37 : vector<128xf32> to vector<1x128xf32>
    %39 = arith.mulf %36, %36 : vector<8x128xf32>
    %cst_21 = arith.constant dense<0.000000e+00> : vector<128xf32>
    %40 = vector.multi_reduction <add>, %39, %cst_21 [0] : vector<8x128xf32> to vector<128xf32>
    %41 = vector.shape_cast %40 : vector<128xf32> to vector<1x128xf32>
    %cst_22 = arith.constant 1.250000e-01 : f32
    %42 = vector.broadcast %cst_22 : f32 to vector<1x128xf32>
    %43 = arith.mulf %38, %42 : vector<1x128xf32>
    %cst_23 = arith.constant 1.250000e-01 : f32
    %44 = vector.broadcast %cst_23 : f32 to vector<1x128xf32>
    %45 = arith.mulf %41, %44 : vector<1x128xf32>
    %46 = arith.mulf %43, %43 : vector<1x128xf32>
    %47 = arith.subf %45, %46 : vector<1x128xf32>
    %cst_24 = arith.constant 0.000000e+00 : f32
    %48 = vector.broadcast %cst_24 : f32 to vector<1x128xf32>
    %49 = arith.maximumf %47, %48 : vector<1x128xf32>
    %c1_25 = arith.constant 1 : index
    %c0_26 = arith.constant 0 : index
    %c0_27 = arith.constant 0 : index
    %50 = vector.load %arg2[%c1_25, %c0_26, %c0_27] : memref<2x1x128xf32, #tpu.memory_space<vmem>>, vector<1x1x128xf32>
    %51 = vector.shape_cast %50 : vector<1x1x128xf32> to vector<1x128xf32>
    %cst_28 = arith.constant 9.99999974E-6 : f32
    %52 = vector.broadcast %cst_28 : f32 to vector<1x128xf32>
    %53 = arith.addf %49, %52 : vector<1x128xf32>
    %54 = math.rsqrt %53 : vector<1x128xf32>
    %55 = arith.mulf %51, %54 : vector<1x128xf32>
    %c1_29 = arith.constant 1 : index
    %c0_30 = arith.constant 0 : index
    %c0_31 = arith.constant 0 : index
    %56 = vector.load %arg3[%c1_29, %c0_30, %c0_31] : memref<2x1x128xf32, #tpu.memory_space<vmem>>, vector<1x1x128xf32>
    %57 = vector.shape_cast %56 : vector<1x1x128xf32> to vector<1x128xf32>
    %58 = arith.mulf %43, %55 : vector<1x128xf32>
    %59 = arith.subf %57, %58 : vector<1x128xf32>
    %60 = vector.broadcast %55 : vector<1x128xf32> to vector<8x128xf32>
    %61 = arith.mulf %36, %60 : vector<8x128xf32>
    %62 = vector.broadcast %59 : vector<1x128xf32> to vector<8x128xf32>
    %63 = arith.addf %61, %62 : vector<8x128xf32>
    %cst_32 = arith.constant 0.000000e+00 : f32
    %64 = vector.broadcast %cst_32 : f32 to vector<8x128xf32>
    %65 = arith.maximumf %63, %64 : vector<8x128xf32>
    %66 = arith.addf %33, %65 : vector<8x128xf32>
    %c0_33 = arith.constant 0 : index
    %c0_34 = arith.constant 0 : index
    %67 = vector.load %arg4[%c0_33, %c0_34] : memref<128x128xf32, #tpu.memory_space<vmem>>, vector<128x128xf32>
    %cst_35 = arith.constant dense<0.000000e+00> : vector<8x128xf32>
    %68 = tpu.matmul %66, %67, %cst_35 {dimension_numbers = #tpu.dot_dimension_numbers<[1], [0], [0], [1], [0, 0, 1, 1], [], []>} : vector<8x128xf32>, vector<128x128xf32>, vector<8x128xf32> -> vector<8x128xf32>
    %c0_36 = arith.constant 0 : index
    %c0_37 = arith.constant 0 : index
    %69 = vector.load %arg5[%c0_36, %c0_37] : memref<1x128xf32, #tpu.memory_space<vmem>>, vector<1x128xf32>
    %70 = vector.broadcast %69 : vector<1x128xf32> to vector<8x128xf32>
    %71 = arith.addf %68, %70 : vector<8x128xf32>
    %c0_38 = arith.constant 0 : index
    %c0_39 = arith.constant 0 : index
    %72 = vector.load %arg6[%c0_38, %c0_39] : memref<8x128xf32, #tpu.memory_space<vmem>>, vector<8x128xf32>
    tpu.vector_store %arg6[%c0_38, %c0_39], %71 {strides = array<i32>} : memref<8x128xf32, #tpu.memory_space<vmem>>, vector<8x128xf32>,
    return
  }
}

</mosaic_0001>

<llo_original>
// kernel: tpu_custom_call.1
$region0: #{tpu_custom_call.1}
  #allocation0 [shape = 'u32[]', space=smem, size = 0x4, offset = 0x4, fixed_abs, tag = 'smem constant byte address 0x4 - core index']
  #allocation1 [shape = 'u32[144,128]{1,0:T(1,128)}', space=vmem, size = 0x12000, scoped, tag = 'internal scratch']
  %s0 = inlined_call_operand.hbm [shape: f32[8,128], index: 0, kind: input, shape index: {}]
  %s1 = inlined_call_operand.hbm [shape: f32[2,128,128], index: 1, kind: input, shape index: {}]
  %s2 = inlined_call_operand.vmem [shape: f32[2,1,128], index: 2, kind: input, shape index: {}]
  %s3 = inlined_call_operand.vmem [shape: f32[2,1,128], index: 3, kind: input, shape index: {}]
  %s4 = inlined_call_operand.hbm [shape: f32[128,128], index: 4, kind: input, shape index: {}]
  %s5 = inlined_call_operand.vmem [shape: f32[1,128], index: 5, kind: input, shape index: {}]
  %s6 = inlined_call_operand.hbm [shape: f32[8,128], index: 6, kind: output, shape index: {}]
  %s7 = sld [smem:[#allocation0]]
  $region46: #{tpu_custom_call.1} parent=0
    _
  %s9 = ssub.s32 1, %s7
  %s10 = scalar_select 0, %s9, %s7
  $region1: #{tpu_custom_call.1} parent=0
    #allocation2 [shape = 'u8[4096]{0}', space=vmem, size = 0x1000, scoped, tag = 'input window, operand 0, single buffered']
    #allocation3 [shape = 's32[1]{0}', space=sflag, size = 0x4, scoped, tag = 'scoped memory for tpu_custom_call.1']
    #allocation4 [shape = 's32[1]{0}', space=sflag, size = 0x4, scoped, tag = 'scoped memory for tpu_custom_call.1']
    #allocation5 [shape = 'u8[131072]{0}', space=vmem, size = 0x20000, scoped, tag = 'input window, operand 1, single buffered']
    #allocation6 [shape = 's32[1]{0}', space=sflag, size = 0x4, scoped, tag = 'scoped memory for tpu_custom_call.1']
    #allocation7 [shape = 'u8[65536]{0}', space=vmem, size = 0x10000, scoped, tag = 'input window, operand 4, single buffered']
    #allocation8 [shape = 'u8[4096]{0}', space=vmem, size = 0x1000, scoped, tag = 'output window, operand 0, single buffered']
    %11 = vsyncpa [#allocation3], 0
    %12 = vsyncpa [#allocation6], 0
    %13 = vsyncpa [#allocation4], 0
    // Predicated region
    $region2: #{tpu_custom_call.1} parent=1 // pred_check
      _
    $region3: #{tpu_custom_call.1} parent=1 // pred_check_branch
      %15 = sbr.rel (0) target = $region5
    $region4: #{tpu_custom_call.1} parent=1 // pred_region
      %s17 = ssub.s32 128, 128
      %18 = vsyncadd [#allocation3], %s17
      %s20 = sshll.u32 [#allocation2], 4
      %s21 = int_to_ptr.vmem [resolvable:$true] %s20
      %23 = dma.hbm_to_vmem [thread:$0]  %s0, 128, %s21, [#allocation3]
    $region5: #{tpu_custom_call.1} parent=1 // pred_fallthru
      _
    // Predicated region
    $region6: #{tpu_custom_call.1} parent=1 // pred_check
      _
    $region7: #{tpu_custom_call.1} parent=1 // pred_check_branch
      %25 = sbr.rel (0) target = $region9
    $region8: #{tpu_custom_call.1} parent=1 // pred_region
      %s27 = ssub.s32 4096, 4096
      %28 = vsyncadd [#allocation6], %s27
      %s29 = sshll.u32 [#allocation5], 4
      %s30 = int_to_ptr.vmem [resolvable:$true] %s29
      %35 = dma.hbm_to_vmem [thread:$0]  %s1, 4096, %s30, [#allocation6], 128, 128, 8
    $region9: #{tpu_custom_call.1} parent=1 // pred_fallthru
      _
    // Predicated region
    $region10: #{tpu_custom_call.1} parent=1 // pred_check
      _
    $region11: #{tpu_custom_call.1} parent=1 // pred_check_branch
      %37 = sbr.rel (0) target = $region13
    $region12: #{tpu_custom_call.1} parent=1 // pred_region
      _
    $region13: #{tpu_custom_call.1} parent=1 // pred_fallthru
      _
    // Predicated region
    $region14: #{tpu_custom_call.1} parent=1 // pred_check
      _
    $region15: #{tpu_custom_call.1} parent=1 // pred_check_branch
      %39 = sbr.rel (0) target = $region17
    $region16: #{tpu_custom_call.1} parent=1 // pred_region
      _
    $region17: #{tpu_custom_call.1} parent=1 // pred_fallthru
      _
    // Predicated region
    $region18: #{tpu_custom_call.1} parent=1 // pred_check
      _
    $region19: #{tpu_custom_call.1} parent=1 // pred_check_branch
      %41 = sbr.rel (0) target = $region21
    $region20: #{tpu_custom_call.1} parent=1 // pred_region
      %s43 = ssub.s32 2048, 2048
      %44 = vsyncadd [#allocation6], %s43
      %s45 = sshll.u32 [#allocation7], 4
      %s46 = int_to_ptr.vmem [resolvable:$true] %s45
      %51 = dma.hbm_to_vmem [thread:$0]  %s4, 2048, %s46, [#allocation6], 128, 128, 8
    $region21: #{tpu_custom_call.1} parent=1 // pred_fallthru
      _
    // Predicated region
    $region22: #{tpu_custom_call.1} parent=1 // pred_check
      _
    $region23: #{tpu_custom_call.1} parent=1 // pred_check_branch
      %53 = sbr.rel (0) target = $region25
    $region24: #{tpu_custom_call.1} parent=1 // pred_region
      _
    $region25: #{tpu_custom_call.1} parent=1 // pred_fallthru
      _
    // Predicated region
    $region26: #{tpu_custom_call.1} parent=1 // pred_check
      _
    $region27: #{tpu_custom_call.1} parent=1 // pred_check_branch
      %55 = sbr.rel (0) target = $region29
    $region28: #{tpu_custom_call.1} parent=1 // pred_region
      %56 = dma.done [#allocation3], 128
    $region29: #{tpu_custom_call.1} parent=1 // pred_fallthru
      _
    // Predicated region
    $region30: #{tpu_custom_call.1} parent=1 // pred_check
      _
    $region31: #{tpu_custom_call.1} parent=1 // pred_check_branch
      %58 = sbr.rel (0) target = $region33
    $region32: #{tpu_custom_call.1} parent=1 // pred_region
      %59 = dma.done [#allocation6], 4096
    $region33: #{tpu_custom_call.1} parent=1 // pred_fallthru
      _
    // Predicated region
    $region34: #{tpu_custom_call.1} parent=1 // pred_check
      _
    $region35: #{tpu_custom_call.1} parent=1 // pred_check_branch
      %61 = sbr.rel (0) target = $region37
    $region36: #{tpu_custom_call.1} parent=1 // pred_region
      %62 = dma.done [#allocation6], 2048
    $region37: #{tpu_custom_call.1} parent=1 // pred_fallthru
      _
    %v63 = vld [vmem:[#allocation2] sm:$0xff]
    %v64 = vld [vmem:[#allocation5] sm:$0xff]
    %v65 = vld [vmem:[#allocation5 + $0x8] sm:$0xff]
    %v66 = vld [vmem:[#allocation5 + $0x10] sm:$0xff]
    %v67 = vld [vmem:[#allocation5 + $0x18] sm:$0xff]
    %v68 = vld [vmem:[#allocation5 + $0x20] sm:$0xff]
    %v69 = vld [vmem:[#allocation5 + $0x28] sm:$0xff]
    %v70 = vld [vmem:[#allocation5 + $0x30] sm:$0xff]
    %v71 = vld [vmem:[#allocation5 + $0x38] sm:$0xff]
    %v72 = vld [vmem:[#allocation5 + $0x40] sm:$0xff]
    %v73 = vld [vmem:[#allocation5 + $0x48] sm:$0xff]
    %v74 = vld [vmem:[#allocation5 + $0x50] sm:$0xff]
    %v75 = vld [vmem:[#allocation5 + $0x58] sm:$0xff]
    %v76 = vld [vmem:[#allocation5 + $0x60] sm:$0xff]
    %v77 = vld [vmem:[#allocation5 + $0x68] sm:$0xff]
    %v78 = vld [vmem:[#allocation5 + $0x70] sm:$0xff]
    %v79 = vld [vmem:[#allocation5 + $0x78] sm:$0xff]
    %80 = vmatprep.subr.mxu0 0.0
    %81 = vmatpush1.msra.mxu0 %v64
    %82 = vmatprep.subr.mxu0 0.0
    %83 = vmatpush1.msra.mxu0 %v65
    %84 = vmatprep.subr.mxu0 0.0
    %85 = vmatpush1.msra.mxu0 %v66
    %86 = vmatprep.subr.mxu0 0.0
    %87 = vmatpush1.msra.mxu0 %v67
    %88 = vmatprep.subr.mxu0 0.0
    %89 = vmatpush1.msra.mxu0 %v68
    %90 = vmatprep.subr.mxu0 0.0
    %91 = vmatpush1.msra.mxu0 %v69
    %92 = vmatprep.subr.mxu0 0.0
    %93 = vmatpush1.msra.mxu0 %v70
    %94 = vmatprep.subr.mxu0 0.0
    %95 = vmatpush1.msra.mxu0 %v71
    %96 = vmatprep.subr.mxu0 0.0
    %97 = vmatpush1.msra.mxu0 %v72
    %98 = vmatprep.subr.mxu0 0.0
    %99 = vmatpush1.msra.mxu0 %v73
    %100 = vmatprep.subr.mxu0 0.0
    %101 = vmatpush1.msra.mxu0 %v74
    %102 = vmatprep.subr.mxu0 0.0
    %103 = vmatpush1.msra.mxu0 %v75
    %104 = vmatprep.subr.mxu0 0.0
    %105 = vmatpush1.msra.mxu0 %v76
    %106 = vmatprep.subr.mxu0 0.0
    %107 = vmatpush1.msra.mxu0 %v77
    %108 = vmatprep.subr.mxu0 0.0
    %109 = vmatpush1.msra.mxu0 %v78
    %110 = vmatprep.subr.mxu0 0.0
    %111 = vmatpush1.msra.mxu0 %v79
    %112 = vmatprep.subr.mxu0 0.0
    %113 = vmatpush1.msra.mxu0 0.0
    %114 = vmatprep.subr.mxu0 0.0
    %115 = vmatpush1.msra.mxu0 0.0
    %116 = vmatprep.subr.mxu0 0.0
    %117 = vmatpush1.msra.mxu0 0.0
    %118 = vmatprep.subr.mxu0 0.0
    %119 = vmatpush1.msra.mxu0 0.0
    %120 = vmatprep.subr.mxu0 0.0
    %121 = vmatpush1.msra.mxu0 0.0
    %122 = vmatprep.subr.mxu0 0.0
    %123 = vmatpush1.msra.mxu0 0.0
    %124 = vmatprep.subr.mxu0 0.0
    %125 = vmatpush1.msra.mxu0 0.0
    %126 = vmatprep.subr.mxu0 0.0
    %127 = vmatpush1.msra.mxu0 0.0
    %128 = vmatprep.subr.mxu0 0.0
    %129 = vmatpush1.msra.mxu0 0.0
    %130 = vmatprep.subr.mxu0 0.0
    %131 = vmatpush1.msra.mxu0 0.0
    %132 = vmatprep.subr.mxu0 0.0
    %133 = vmatpush1.msra.mxu0 0.0
    %134 = vmatprep.subr.mxu0 0.0
    %135 = vmatpush1.msra.mxu0 0.0
    %136 = vmatprep.subr.mxu0 0.0
    %137 = vmatpush1.msra.mxu0 0.0
    %138 = vmatprep.subr.mxu0 0.0
    %139 = vmatpush1.msra.mxu0 0.0
    %140 = vmatprep.subr.mxu0 0.0
    %141 = vmatpush1.msra.mxu0 0.0
    %142 = vmatprep.subr.mxu0 0.0
    %143 = vmatpush1.msra.mxu0 0.0
    %144 = vmatprep.mubr.f32.mxu0 0.0
    %145 = vmatmul.mubr.f32.gmra.mrb[0].mxu0 %v63
    %v146 = vpop.f32.mrb[0].mxu0
    %v147 = vadd.f32 0.0, %v146
    %v148 = vpop.f32.mrb[0].mxu0
    %149 = vdwg.mxu0
    %v150 = vrot.slane %v147, 4
    %v151 = vadd.f32 %v147, %v150
    %v152 = vrot.slane %v151, 2
    %v153 = vadd.f32 %v151, %v152
    %v154 = vrot.slane %v153, 1
    %v155 = vadd.f32 %v153, %v154
    %v156 = vmul.f32 %v147, %v147
    %v157 = vrot.slane %v156, 4
    %v158 = vadd.f32 %v156, %v157
    %v159 = vrot.slane %v158, 2
    %v160 = vadd.f32 %v158, %v159
    %v161 = vrot.slane %v160, 1
    %v162 = vadd.f32 %v160, %v161
    %v163 = vmul.f32 %v155, 0.125
    %v164 = vmul.f32 %v162, 0.125
    %v165 = vmul.f32 %v163, %v163
    %v166 = vsub.f32 %v164, %v165
    %v167 = vmax.f32 %v166, 0.0
    %v168 = vld [vmem:[%s2] sm:$0x1]
    %v169 = vadd.f32 %v167, 1e-05
    %v170 = vrsqrt.pop %v169
    %v171 = vmul.f32 %v168, %v170
    %v172 = vld [vmem:[%s3] sm:$0x1]
    %v173 = vmul.f32 %v163, %v171
    %v174 = vsub.f32 %v172, %v173
    %v176 = vlaneseq
    %v177 = vshrl.u32 %v176, 7
    %v178 = vsub.s32 0, %v177
    %v179 = vrot.slane %v171, %v178
    %v181 = vmul.f32 %v147, %v179
    %v183 = vlaneseq
    %v184 = vshrl.u32 %v183, 7
    %v185 = vsub.s32 0, %v184
    %v186 = vrot.slane %v174, %v185
    %v188 = vadd.f32 %v181, %v186
    %v189 = vmax.f32 %v188, 0.0
    %v190 = vadd.f32 %v63, %v189
    %s191 = scalar_lea.vmem [#allocation5], 128
    %v192 = vld [vmem:[%s191] sm:$0xff]
    %v193 = vld [vmem:[%s191 + $0x8] sm:$0xff]
    %v194 = vld [vmem:[%s191 + $0x10] sm:$0xff]
    %v195 = vld [vmem:[%s191 + $0x18] sm:$0xff]
    %v196 = vld [vmem:[%s191 + $0x20] sm:$0xff]
    %v197 = vld [vmem:[%s191 + $0x28] sm:$0xff]
    %v198 = vld [vmem:[%s191 + $0x30] sm:$0xff]
    %v199 = vld [vmem:[%s191 + $0x38] sm:$0xff]
    %v200 = vld [vmem:[%s191 + $0x40] sm:$0xff]
    %v201 = vld [vmem:[%s191 + $0x48] sm:$0xff]
    %v202 = vld [vmem:[%s191 + $0x50] sm:$0xff]
    %v203 = vld [vmem:[%s191 + $0x58] sm:$0xff]
    %v204 = vld [vmem:[%s191 + $0x60] sm:$0xff]
    %v205 = vld [vmem:[%s191 + $0x68] sm:$0xff]
    %v206 = vld [vmem:[%s191 + $0x70] sm:$0xff]
    %v207 = vld [vmem:[%s191 + $0x78] sm:$0xff]
    %208 = vmatprep.subr.mxu0 0.0
    %209 = vmatpush1.msra.mxu0 %v192
    %210 = vmatprep.subr.mxu0 0.0
    %211 = vmatpush1.msra.mxu0 %v193
    %212 = vmatprep.subr.mxu0 0.0
    %213 = vmatpush1.msra.mxu0 %v194
    %214 = vmatprep.subr.mxu0 0.0
    %215 = vmatpush1.msra.mxu0 %v195
    %216 = vmatprep.subr.mxu0 0.0
    %217 = vmatpush1.msra.mxu0 %v196
    %218 = vmatprep.subr.mxu0 0.0
    %219 = vmatpush1.msra.mxu0 %v197
    %220 = vmatprep.subr.mxu0 0.0
    %221 = vmatpush1.msra.mxu0 %v198
    %222 = vmatprep.subr.mxu0 0.0
    %223 = vmatpush1.msra.mxu0 %v199
    %224 = vmatprep.subr.mxu0 0.0
    %225 = vmatpush1.msra.mxu0 %v200
    %226 = vmatprep.subr.mxu0 0.0
    %227 = vmatpush1.msra.mxu0 %v201
    %228 = vmatprep.subr.mxu0 0.0
    %229 = vmatpush1.msra.mxu0 %v202
    %230 = vmatprep.subr.mxu0 0.0
    %231 = vmatpush1.msra.mxu0 %v203
    %232 = vmatprep.subr.mxu0 0.0
    %233 = vmatpush1.msra.mxu0 %v204
    %234 = vmatprep.subr.mxu0 0.0
    %235 = vmatpush1.msra.mxu0 %v205
    %236 = vmatprep.subr.mxu0 0.0
    %237 = vmatpush1.msra.mxu0 %v206
    %238 = vmatprep.subr.mxu0 0.0
    %239 = vmatpush1.msra.mxu0 %v207
    %240 = vmatprep.subr.mxu0 0.0
    %241 = vmatpush1.msra.mxu0 0.0
    %242 = vmatprep.subr.mxu0 0.0
    %243 = vmatpush1.msra.mxu0 0.0
    %244 = vmatprep.subr.mxu0 0.0
    %245 = vmatpush1.msra.mxu0 0.0
    %246 = vmatprep.subr.mxu0 0.0
    %247 = vmatpush1.msra.mxu0 0.0
    %248 = vmatprep.subr.mxu0 0.0
    %249 = vmatpush1.msra.mxu0 0.0
    %250 = vmatprep.subr.mxu0 0.0
    %251 = vmatpush1.msra.mxu0 0.0
    %252 = vmatprep.subr.mxu0 0.0
    %253 = vmatpush1.msra.mxu0 0.0
    %254 = vmatprep.subr.mxu0 0.0
    %255 = vmatpush1.msra.mxu0 0.0
    %256 = vmatprep.subr.mxu0 0.0
    %257 = vmatpush1.msra.mxu0 0.0
    %258 = vmatprep.subr.mxu0 0.0
    %259 = vmatpush1.msra.mxu0 0.0
    %260 = vmatprep.subr.mxu0 0.0
    %261 = vmatpush1.msra.mxu0 0.0
    %262 = vmatprep.subr.mxu0 0.0
    %263 = vmatpush1.msra.mxu0 0.0
    %264 = vmatprep.subr.mxu0 0.0
    %265 = vmatpush1.msra.mxu0 0.0
    %266 = vmatprep.subr.mxu0 0.0
    %267 = vmatpush1.msra.mxu0 0.0
    %268 = vmatprep.subr.mxu0 0.0
    %269 = vmatpush1.msra.mxu0 0.0
    %270 = vmatprep.subr.mxu0 0.0
    %271 = vmatpush1.msra.mxu0 0.0
    %272 = vmatprep.mubr.f32.mxu0 0.0
    %273 = vmatmul.mubr.f32.gmra.mrb[0].mxu0 %v190
    %v274 = vpop.f32.mrb[0].mxu0
    %v275 = vadd.f32 0.0, %v274
    %v276 = vpop.f32.mrb[0].mxu0
    %277 = vdwg.mxu0
    %v278 = vrot.slane %v275, 4
    %v279 = vadd.f32 %v275, %v278
    %v280 = vrot.slane %v279, 2
    %v281 = vadd.f32 %v279, %v280
    %v282 = vrot.slane %v281, 1
    %v283 = vadd.f32 %v281, %v282
    %v284 = vmul.f32 %v275, %v275
    %v285 = vrot.slane %v284, 4
    %v286 = vadd.f32 %v284, %v285
    %v287 = vrot.slane %v286, 2
    %v288 = vadd.f32 %v286, %v287
    %v289 = vrot.slane %v288, 1
    %v290 = vadd.f32 %v288, %v289
    %v291 = vmul.f32 %v283, 0.125
    %v292 = vmul.f32 %v290, 0.125
    %v293 = vmul.f32 %v291, %v291
    %v294 = vsub.f32 %v292, %v293
    %v295 = vmax.f32 %v294, 0.0
    %s296 = scalar_lea.vmem %s2, 1
    %v297 = vld [vmem:[%s296] sm:$0x1]
    %v298 = vadd.f32 %v295, 1e-05
    %v299 = vrsqrt.pop %v298
    %v300 = vmul.f32 %v297, %v299
    %s301 = scalar_lea.vmem %s3, 1
    %v302 = vld [vmem:[%s301] sm:$0x1]
    %v303 = vmul.f32 %v291, %v300
    %v304 = vsub.f32 %v302, %v303
    %v306 = vlaneseq
    %v307 = vshrl.u32 %v306, 7
    %v308 = vsub.s32 0, %v307
    %v309 = vrot.slane %v300, %v308
    %v311 = vmul.f32 %v275, %v309
    %v313 = vlaneseq
    %v314 = vshrl.u32 %v313, 7
    %v315 = vsub.s32 0, %v314
    %v316 = vrot.slane %v304, %v315
    %v318 = vadd.f32 %v311, %v316
    %v319 = vmax.f32 %v318, 0.0
    %v320 = vadd.f32 %v190, %v319
    %v321 = vld [vmem:[#allocation7] sm:$0xff]
    %v322 = vld [vmem:[#allocation7 + $0x8] sm:$0xff]
    %v323 = vld [vmem:[#allocation7 + $0x10] sm:$0xff]
    %v324 = vld [vmem:[#allocation7 + $0x18] sm:$0xff]
    %v325 = vld [vmem:[#allocation7 + $0x20] sm:$0xff]
    %v326 = vld [vmem:[#allocation7 + $0x28] sm:$0xff]
    %v327 = vld [vmem:[#allocation7 + $0x30] sm:$0xff]
    %v328 = vld [vmem:[#allocation7 + $0x38] sm:$0xff]
    %v329 = vld [vmem:[#allocation7 + $0x40] sm:$0xff]
    %v330 = vld [vmem:[#allocation7 + $0x48] sm:$0xff]
    %v331 = vld [vmem:[#allocation7 + $0x50] sm:$0xff]
    %v332 = vld [vmem:[#allocation7 + $0x58] sm:$0xff]
    %v333 = vld [vmem:[#allocation7 + $0x60] sm:$0xff]
    %v334 = vld [vmem:[#allocation7 + $0x68] sm:$0xff]
    %v335 = vld [vmem:[#allocation7 + $0x70] sm:$0xff]
    %v336 = vld [vmem:[#allocation7 + $0x78] sm:$0xff]
    %v337 = vld [vmem:[%s5] sm:$0x1]
    %v339 = vlaneseq
    %v340 = vshrl.u32 %v339, 7
    %v341 = vsub.s32 0, %v340
    %v342 = vrot.slane %v337, %v341
    %344 = vmatprep.subr.mxu0 0.0
    %345 = vmatpush1.msra.mxu0 %v321
    %346 = vmatprep.subr.mxu0 0.0
    %347 = vmatpush1.msra.mxu0 %v322
    %348 = vmatprep.subr.mxu0 0.0
    %349 = vmatpush1.msra.mxu0 %v323
    %350 = vmatprep.subr.mxu0 0.0
    %351 = vmatpush1.msra.mxu0 %v324
    %352 = vmatprep.subr.mxu0 0.0
    %353 = vmatpush1.msra.mxu0 %v325
    %354 = vmatprep.subr.mxu0 0.0
    %355 = vmatpush1.msra.mxu0 %v326
    %356 = vmatprep.subr.mxu0 0.0
    %357 = vmatpush1.msra.mxu0 %v327
    %358 = vmatprep.subr.mxu0 0.0
    %359 = vmatpush1.msra.mxu0 %v328
    %360 = vmatprep.subr.mxu0 0.0
    %361 = vmatpush1.msra.mxu0 %v329
    %362 = vmatprep.subr.mxu0 0.0
    %363 = vmatpush1.msra.mxu0 %v330
    %364 = vmatprep.subr.mxu0 0.0
    %365 = vmatpush1.msra.mxu0 %v331
    %366 = vmatprep.subr.mxu0 0.0
    %367 = vmatpush1.msra.mxu0 %v332
    %368 = vmatprep.subr.mxu0 0.0
    %369 = vmatpush1.msra.mxu0 %v333
    %370 = vmatprep.subr.mxu0 0.0
    %371 = vmatpush1.msra.mxu0 %v334
    %372 = vmatprep.subr.mxu0 0.0
    %373 = vmatpush1.msra.mxu0 %v335
    %374 = vmatprep.subr.mxu0 0.0
    %375 = vmatpush1.msra.mxu0 %v336
    %376 = vmatprep.subr.mxu0 0.0
    %377 = vmatpush1.msra.mxu0 0.0
    %378 = vmatprep.subr.mxu0 0.0
    %379 = vmatpush1.msra.mxu0 0.0
    %380 = vmatprep.subr.mxu0 0.0
    %381 = vmatpush1.msra.mxu0 0.0
    %382 = vmatprep.subr.mxu0 0.0
    %383 = vmatpush1.msra.mxu0 0.0
    %384 = vmatprep.subr.mxu0 0.0
    %385 = vmatpush1.msra.mxu0 0.0
    %386 = vmatprep.subr.mxu0 0.0
    %387 = vmatpush1.msra.mxu0 0.0
    %388 = vmatprep.subr.mxu0 0.0
    %389 = vmatpush1.msra.mxu0 0.0
    %390 = vmatprep.subr.mxu0 0.0
    %391 = vmatpush1.msra.mxu0 0.0
    %392 = vmatprep.subr.mxu0 0.0
    %393 = vmatpush1.msra.mxu0 0.0
    %394 = vmatprep.subr.mxu0 0.0
    %395 = vmatpush1.msra.mxu0 0.0
    %396 = vmatprep.subr.mxu0 0.0
    %397 = vmatpush1.msra.mxu0 0.0
    %398 = vmatprep.subr.mxu0 0.0
    %399 = vmatpush1.msra.mxu0 0.0
    %400 = vmatprep.subr.mxu0 0.0
    %401 = vmatpush1.msra.mxu0 0.0
    %402 = vmatprep.subr.mxu0 0.0
    %403 = vmatpush1.msra.mxu0 0.0
    %404 = vmatprep.subr.mxu0 0.0
    %405 = vmatpush1.msra.mxu0 0.0
    %406 = vmatprep.subr.mxu0 0.0
    %407 = vmatpush1.msra.mxu0 0.0
    %408 = vmatprep.mubr.f32.mxu0 0.0
    %409 = vmatmul.mubr.f32.gmra.mrb[0].mxu0 %v320
    %v410 = vpop.f32.mrb[0].mxu0
    %v411 = vadd.f32 %v342, %v410
    %v412 = vpop.f32.mrb[0].mxu0
    %413 = vdwg.mxu0
    %414 = vst [vmem:[#allocation8] sm:$0xff] %v411
    // Predicated region
    $region38: #{tpu_custom_call.1} parent=1 // pred_check
      _
    $region39: #{tpu_custom_call.1} parent=1 // pred_check_branch
      %416 = sbr.rel (0) target = $region41
    $region40: #{tpu_custom_call.1} parent=1 // pred_region
      %s418 = ssub.s32 128, 128
      %419 = vsyncadd [#allocation4], %s418
      %s421 = sshll.u32 [#allocation8], 4
      %s422 = int_to_ptr.vmem [resolvable:$true] %s421
      %424 = dma.vmem_to_hbm [thread:$0]  %s422, 128, %s6, [#allocation4]
    $region41: #{tpu_custom_call.1} parent=1 // pred_fallthru
      _
    // Predicated region
    $region42: #{tpu_custom_call.1} parent=1 // pred_check
      _
    $region43: #{tpu_custom_call.1} parent=1 // pred_check_branch
      %426 = sbr.rel (0) target = $region45
    $region44: #{tpu_custom_call.1} parent=1 // pred_region
      %427 = dma.done [#allocation4], 128
    $region45: #{tpu_custom_call.1} parent=1 // pred_fallthru
      _
    %428 = vsyncpa [#allocation3], 1
    %429 = vsyncpa [#allocation6], 1
    %430 = vsyncpa [#allocation4], 1

</llo_original>
